<compile_context>
chip_gen: v7x
topology: tpu7x:2x2x1
jax: 0.10.0
libtpu: 0.0.40
codegen_flags: <defaults>
</compile_context>

<pallas_src>
import jax
import jax.numpy as jnp
from jax.experimental import pallas as pl
from jax.experimental.pallas import tpu as pltpu

_LANE = 128
_RAGGED_BLOCK_ELEMS = 512 * _LANE  # 65536 elems; small enough for any VMEM budget


def _sigmoid_kernel(x_ref, o_ref):
    # Logistic runs on the EUP slot (otherwise idle); upcast to f32 is free
    # in a bandwidth-bound kernel and gives f32-parity for bf16 inputs.
    x = x_ref[...]
    o_ref[...] = jax.nn.sigmoid(x.astype(jnp.float32)).astype(o_ref.dtype)


def _tpu_generation():
    try:
        kind = jax.devices()[0].device_kind.lower()
    except Exception:
        return None
    if "v6" in kind:
        return "v6e"
    if "v5 lite" in kind or "v5e" in kind or "v5lite" in kind:
        return "v5e"
    if "7x" in kind or "v7" in kind:
        return "v7x"
    return None


def _gen_config(gen):
    """Returns (target_block_bytes, dimension_semantics, vmem_limit_bytes)."""
    if gen == "v5e":
        return 2 * 1024 * 1024, "parallel", None
    if gen == "v6e":
        return 4 * 1024 * 1024, "parallel", None
    if gen == "v7x":
        sem = getattr(pltpu, "CORE_PARALLEL", "parallel")
        return 8 * 1024 * 1024, sem, 48 * 1024 * 1024
    # Unknown chip: conservative defaults that fit every scoped-VMEM budget.
    return 2 * 1024 * 1024, "parallel", None


def _choose_width(n):
    """Widest lane-dense width that divides n exactly (no padding needed)."""
    for w in (4096, 2048, 1024, 512, 256, _LANE):
        if n % w == 0:
            return w
    return _LANE


def _cost(n, itemsize):
    return pl.CostEstimate(flops=0, transcendentals=n,
                           bytes_accessed=2 * n * itemsize)


def _run_tiled_rows(x2d, block_rows, semantics, vmem_limit, n, itemsize):
    rows, width = x2d.shape
    grid_rows = pl.cdiv(rows, block_rows)
    cparams = dict(dimension_semantics=(semantics,))
    if vmem_limit is not None:
        cparams["vmem_limit_bytes"] = int(vmem_limit)
    return pl.pallas_call(
        _sigmoid_kernel,
        out_shape=jax.ShapeDtypeStruct((rows, width), x2d.dtype),
        grid_spec=pltpu.PrefetchScalarGridSpec(
            num_scalar_prefetch=0,
            grid=(grid_rows,),
            in_specs=[pl.BlockSpec((block_rows, width), lambda i: (i, 0))],
            out_specs=pl.BlockSpec((block_rows, width), lambda i: (i, 0)),
        ),
        compiler_params=pltpu.CompilerParams(**cparams),
        cost_estimate=_cost(n, itemsize),
    )(x2d)


def _run_ragged_lanes(x2d, block_cols, n, itemsize):
    # x2d has shape (1, n); tile along the lane axis.  block_cols is either a
    # multiple of 128 (partial final block masked by Pallas) or the full dim.
    _, width = x2d.shape
    grid_cols = pl.cdiv(width, block_cols)
    return pl.pallas_call(
        _sigmoid_kernel,
        out_shape=jax.ShapeDtypeStruct(x2d.shape, x2d.dtype),
        grid_spec=pltpu.PrefetchScalarGridSpec(
            num_scalar_prefetch=0,
            grid=(grid_cols,),
            in_specs=[pl.BlockSpec((1, block_cols), lambda i: (0, i))],
            out_specs=pl.BlockSpec((1, block_cols), lambda i: (0, i)),
        ),
        compiler_params=pltpu.CompilerParams(dimension_semantics=("arbitrary",)),
        cost_estimate=_cost(n, itemsize),
    )(x2d)


def _sigmoid_forward(x):
    orig_shape = x.shape
    n = x.size
    if n == 0:
        return x
    itemsize = x.dtype.itemsize

    gen = _tpu_generation()
    block_bytes, semantics, vmem_limit = _gen_config(gen)

    # ---- Ragged element count (rare): no pad, no slice, no extra HBM passes.
    if n % _LANE != 0:
        x2d = x.reshape(1, n)
        block_cols = n if n <= _RAGGED_BLOCK_ELEMS else _RAGGED_BLOCK_ELEMS
        out2d = _run_ragged_lanes(x2d, block_cols, n, itemsize)
        return out2d.reshape(orig_shape)

    # ---- Lane-dense 2D slab (pure reshape, no copy).
    width = _choose_width(n)
    rows = n // width
    x2d = x.reshape(rows, width)

    # Sublane packing: 8 rows for f32, 16 for bf16, 32 for int8/fp8 — avoids
    # packed-edge masked stores on the final partial block.
    row_mult = max(8, 32 // itemsize)
    target_rows = max(row_mult,
                      (block_bytes // (width * itemsize)) // row_mult * row_mult)

    if rows <= target_rows:
        block_rows = rows  # single block; full-extent block is always legal
        if gen == "v7x" and rows >= 2 * row_mult:
            # Split into >= 2 blocks so both v7x TensorCores get work.
            block_rows = ((pl.cdiv(rows, 2) + row_mult - 1) // row_mult) * row_mult
    else:
        block_rows = target_rows  # multiple of row_mult; ragged tail masked

    try:
        out2d = _run_tiled_rows(x2d, block_rows, semantics, vmem_limit, n, itemsize)
    except Exception:
        # Conservative fallback for unexpected hardware / lowering quirks:
        # ~2 MiB blocks, plain semantics, default scoped-VMEM limit.
        safe_rows = max(row_mult,
                        ((2 * 1024 * 1024) // (width * itemsize))
                        // row_mult * row_mult)
        safe_block = rows if rows <= safe_rows else safe_rows
        out2d = _run_tiled_rows(x2d, safe_block, "arbitrary", None, n, itemsize)

    return out2d.reshape(orig_shape)


# Forward matches MySigmoid.forward; backward matches MySigmoid.backward
# (grad_output * output * (1 - output)) via the saved output residual.
@jax.custom_vjp
def my_sigmoid(x):
    return _sigmoid_forward(x)


def _my_sigmoid_fwd(x):
    out = _sigmoid_forward(x)
    return out, out


def _my_sigmoid_bwd(out, g):
    return (g * out * (1.0 - out),)


my_sigmoid.defvjp(_my_sigmoid_fwd, _my_sigmoid_bwd)


if __name__ == "__main__":
    key = jax.random.PRNGKey(0)

    # Small shape consistent with a generic elementwise module: NCHW (2,4,16,16).
    x = jax.random.normal(key, (2, 4, 16, 16), dtype=jnp.float32)
    y = my_sigmoid(x)
    jax.block_until_ready(y)
    y_ref = 1.0 / (1.0 + jnp.exp(-x))
    assert y.shape == x.shape and y.dtype == x.dtype
    assert jnp.max(jnp.abs(y - y_ref)) < 1e-5

    # Exercise the ragged (non-multiple-of-128) path: no pad, no slice.
    x2 = jax.random.normal(jax.random.PRNGKey(1), (3, 5, 7), dtype=jnp.float32)
    y2 = my_sigmoid(x2)
    jax.block_until_ready(y2)
    y2_ref = 1.0 / (1.0 + jnp.exp(-x2))
    assert y2.shape == x2.shape and y2.dtype == x2.dtype
    assert jnp.max(jnp.abs(y2 - y2_ref)) < 1e-5

    print("KERNEL_OK")
</pallas_src>

<mosaic_0001>
module attributes {stable_mosaic.version = 11 : i64} {
  func.func @_sigmoid_kernel(%arg0: i32, %arg1: memref<1x2048xf32, #tpu.memory_space<vmem>>, %arg2: memref<1x2048xf32, #tpu.memory_space<vmem>>) attributes {dimension_semantics = [#tpu.dimension_semantics<parallel>], iteration_bounds = array<i64: 1>, scalar_prefetch = 0 : i64, scratch_operands = 0 : i64, tpu.core_type = #tpu.core_type<tc>, window_params = [{transform_indices = @transform_0, window_bounds = array<i64: 1, 2048>}, {transform_indices = @transform_1, window_bounds = array<i64: 1, 2048>}]} {
    %c0 = arith.constant 0 : index
    %c0_0 = arith.constant 0 : index
    %0 = vector.load %arg1[%c0, %c0_0] : memref<1x2048xf32, #tpu.memory_space<vmem>>, vector<1x2048xf32>
    %1 = arith.negf %0 : vector<1x2048xf32>
    %2 = math.exp %1 : vector<1x2048xf32>
    %cst = arith.constant 1.000000e+00 : f32
    %3 = vector.broadcast %cst : f32 to vector<1x2048xf32>
    %4 = arith.addf %3, %2 : vector<1x2048xf32>
    %5 = arith.divf %3, %4 : vector<1x2048xf32>
    %c0_1 = arith.constant 0 : index
    %c0_2 = arith.constant 0 : index
    %6 = vector.load %arg2[%c0_1, %c0_2] : memref<1x2048xf32, #tpu.memory_space<vmem>>, vector<1x2048xf32>
    tpu.vector_store %arg2[%c0_1, %c0_2], %5 {strides = array<i32>} : memref<1x2048xf32, #tpu.memory_space<vmem>>, vector<1x2048xf32>,
    return
  }
  func.func @transform_0(%arg0: i32) -> (i32, i32) {
    %c0_i32 = arith.constant 0 : i32
    %c0_i32_0 = arith.constant 0 : i32
    return %arg0, %c0_i32 : i32, i32
  }
  func.func @transform_1(%arg0: i32) -> (i32, i32) {
    %c0_i32 = arith.constant 0 : i32
    %c0_i32_0 = arith.constant 0 : i32
    return %arg0, %c0_i32 : i32, i32
  }
}

module attributes {stable_mosaic.version = 11 : i64} {
  func.func @_sigmoid_kernel(%arg0: i32, %arg1: memref<1x2048xf32, #tpu.memory_space<vmem>>, %arg2: memref<1x2048xf32, #tpu.memory_space<vmem>>) attributes {dimension_semantics = [#tpu.dimension_semantics<arbitrary>], iteration_bounds = array<i64: 1>, scalar_prefetch = 0 : i64, scratch_operands = 0 : i64, tpu.core_type = #tpu.core_type<tc>, window_params = [{transform_indices = @transform_0, window_bounds = array<i64: 1, 2048>}, {transform_indices = @transform_1, window_bounds = array<i64: 1, 2048>}]} {
    %c0 = arith.constant 0 : index
    %c0_0 = arith.constant 0 : index
    %0 = vector.load %arg1[%c0, %c0_0] : memref<1x2048xf32, #tpu.memory_space<vmem>>, vector<1x2048xf32>
    %1 = arith.negf %0 : vector<1x2048xf32>
    %2 = math.exp %1 : vector<1x2048xf32>
    %cst = arith.constant 1.000000e+00 : f32
    %3 = vector.broadcast %cst : f32 to vector<1x2048xf32>
    %4 = arith.addf %3, %2 : vector<1x2048xf32>
    %5 = arith.divf %3, %4 : vector<1x2048xf32>
    %c0_1 = arith.constant 0 : index
    %c0_2 = arith.constant 0 : index
    %6 = vector.load %arg2[%c0_1, %c0_2] : memref<1x2048xf32, #tpu.memory_space<vmem>>, vector<1x2048xf32>
    tpu.vector_store %arg2[%c0_1, %c0_2], %5 {strides = array<i32>} : memref<1x2048xf32, #tpu.memory_space<vmem>>, vector<1x2048xf32>,
    return
  }
  func.func @transform_0(%arg0: i32) -> (i32, i32) {
    %c0_i32 = arith.constant 0 : i32
    %c0_i32_0 = arith.constant 0 : i32
    return %arg0, %c0_i32 : i32, i32
  }
  func.func @transform_1(%arg0: i32) -> (i32, i32) {
    %c0_i32 = arith.constant 0 : i32
    %c0_i32_0 = arith.constant 0 : i32
    return %arg0, %c0_i32 : i32, i32
  }
}

</mosaic_0001>

<llo_original>
// kernel: tpu_custom_call.1
$region0: #{tpu_custom_call.1}
  #allocation0 [shape = 'u32[]', space=smem, size = 0x4, offset = 0x4, fixed_abs, tag = 'smem constant byte address 0x4 - core index']
  #allocation1 [shape = 'u32[144,128]{1,0:T(1,128)}', space=vmem, size = 0x12000, scoped, tag = 'internal scratch']
  %s0 = inlined_call_operand.hbm [shape: f32[1,2048], index: 0, kind: input, shape index: {}]
  %s1 = inlined_call_operand.hbm [shape: f32[1,2048], index: 1, kind: output, shape index: {}]
  %s2 = sld [smem:[#allocation0]]
  $region18: #{tpu_custom_call.1} parent=0
    _
  %s4 = ssub.s32 1, %s2
  %s5 = scalar_select 0, %s4, %s2
  $region1: #{tpu_custom_call.1} parent=0
    #allocation2 [shape = 'u8[8192]{0}', space=vmem, size = 0x2000, scoped, tag = 'input window, operand 0, single buffered']
    #allocation3 [shape = 's32[1]{0}', space=sflag, size = 0x4, scoped, tag = 'scoped memory for tpu_custom_call.1']
    #allocation4 [shape = 's32[1]{0}', space=sflag, size = 0x4, scoped, tag = 'scoped memory for tpu_custom_call.1']
    #allocation5 [shape = 'u8[8192]{0}', space=vmem, size = 0x2000, scoped, tag = 'output window, operand 0, single buffered']
    %6 = vsyncpa [#allocation3], 0
    %7 = vsyncpa [#allocation4], 0
    // Predicated region
    $region2: #{tpu_custom_call.1} parent=1 // pred_check
      _
    $region3: #{tpu_custom_call.1} parent=1 // pred_check_branch
      %9 = sbr.rel (0) target = $region5
    $region4: #{tpu_custom_call.1} parent=1 // pred_region
      %s11 = ssub.s32 256, 256
      %12 = vsyncadd [#allocation3], %s11
      %s14 = sshll.u32 [#allocation2], 4
      %s15 = int_to_ptr.vmem [resolvable:$true] %s14
      %17 = dma.hbm_to_vmem [thread:$0]  %s0, 256, %s15, [#allocation3]
    $region5: #{tpu_custom_call.1} parent=1 // pred_fallthru
      _
    // Predicated region
    $region6: #{tpu_custom_call.1} parent=1 // pred_check
      _
    $region7: #{tpu_custom_call.1} parent=1 // pred_check_branch
      %19 = sbr.rel (0) target = $region9
    $region8: #{tpu_custom_call.1} parent=1 // pred_region
      %20 = dma.done [#allocation3], 256
    $region9: #{tpu_custom_call.1} parent=1 // pred_fallthru
      _
    %v21 = vld [vmem:[#allocation2] sm:$0xff]
    %v22 = vld [vmem:[#allocation2 + $0x8] sm:$0xff]
    %v23 = vxor.u32 %v21, 2147483648
    %v24 = vxor.u32 %v22, 2147483648
    %v25 = vmul.f32 %v23, 1.442695
    %v26 = vpow.pop %v25
    %v27 = vmul.f32 %v24, 1.442695
    %v28 = vpow.pop %v27
    %v29 = vadd.f32 %v26, 1.0
    %v30 = vadd.f32 %v28, 1.0
    %v31 = vrcp.pop %v29
    %v32 = vmul.f32 1.0, %v31
    %v33 = vrcp.pop %v30
    %v34 = vmul.f32 1.0, %v33
    %35 = vst [vmem:[#allocation5] sm:$0xff] %v32
    %36 = vst [vmem:[#allocation5 + $0x8] sm:$0xff] %v34
    // Predicated region
    $region10: #{tpu_custom_call.1} parent=1 // pred_check
      _
    $region11: #{tpu_custom_call.1} parent=1 // pred_check_branch
      %38 = sbr.rel (0) target = $region13
    $region12: #{tpu_custom_call.1} parent=1 // pred_region
      %s40 = ssub.s32 256, 256
      %41 = vsyncadd [#allocation4], %s40
      %s43 = sshll.u32 [#allocation5], 4
      %s44 = int_to_ptr.vmem [resolvable:$true] %s43
      %46 = dma.vmem_to_hbm [thread:$0]  %s44, 256, %s1, [#allocation4]
    $region13: #{tpu_custom_call.1} parent=1 // pred_fallthru
      _
    // Predicated region
    $region14: #{tpu_custom_call.1} parent=1 // pred_check
      _
    $region15: #{tpu_custom_call.1} parent=1 // pred_check_branch
      %48 = sbr.rel (0) target = $region17
    $region16: #{tpu_custom_call.1} parent=1 // pred_region
      %49 = dma.done [#allocation4], 256
    $region17: #{tpu_custom_call.1} parent=1 // pred_fallthru
      _
    %50 = vsyncpa [#allocation3], 1
    %51 = vsyncpa [#allocation4], 1

// kernel: tpu_custom_call.1
$region0: #{tpu_custom_call.1}
  #allocation0 [shape = 'u32[]', space=smem, size = 0x4, offset = 0x4, fixed_abs, tag = 'smem constant byte address 0x4 - core index']
  #allocation1 [shape = 'u32[144,128]{1,0:T(1,128)}', space=vmem, size = 0x12000, scoped, tag = 'internal scratch']
  %s0 = inlined_call_operand.hbm [shape: f32[1,2048], index: 0, kind: input, shape index: {}]
  %s1 = inlined_call_operand.hbm [shape: f32[1,2048], index: 1, kind: output, shape index: {}]
  %s2 = sld [smem:[#allocation0]]
  $region18: #{tpu_custom_call.1} parent=0
    _
  %s4 = ssub.s32 1, %s2
  %s5 = scalar_select 0, %s4, %s2
  $region1: #{tpu_custom_call.1} parent=0
    #allocation2 [shape = 'u8[8192]{0}', space=vmem, size = 0x2000, scoped, tag = 'input window, operand 0, single buffered']
    #allocation3 [shape = 's32[1]{0}', space=sflag, size = 0x4, scoped, tag = 'scoped memory for tpu_custom_call.1']
    #allocation4 [shape = 's32[1]{0}', space=sflag, size = 0x4, scoped, tag = 'scoped memory for tpu_custom_call.1']
    #allocation5 [shape = 'u8[8192]{0}', space=vmem, size = 0x2000, scoped, tag = 'output window, operand 0, single buffered']
    %6 = vsyncpa [#allocation3], 0
    %7 = vsyncpa [#allocation4], 0
    // Predicated region
    $region2: #{tpu_custom_call.1} parent=1 // pred_check
      _
    $region3: #{tpu_custom_call.1} parent=1 // pred_check_branch
      %9 = sbr.rel (0) target = $region5
    $region4: #{tpu_custom_call.1} parent=1 // pred_region
      %s11 = ssub.s32 256, 256
      %12 = vsyncadd [#allocation3], %s11
      %s14 = sshll.u32 [#allocation2], 4
      %s15 = int_to_ptr.vmem [resolvable:$true] %s14
      %17 = dma.hbm_to_vmem [thread:$0]  %s0, 256, %s15, [#allocation3]
    $region5: #{tpu_custom_call.1} parent=1 // pred_fallthru
      _
    // Predicated region
    $region6: #{tpu_custom_call.1} parent=1 // pred_check
      _
    $region7: #{tpu_custom_call.1} parent=1 // pred_check_branch
      %19 = sbr.rel (0) target = $region9
    $region8: #{tpu_custom_call.1} parent=1 // pred_region
      %20 = dma.done [#allocation3], 256
    $region9: #{tpu_custom_call.1} parent=1 // pred_fallthru
      _
    %v21 = vld [vmem:[#allocation2] sm:$0xff]
    %v22 = vld [vmem:[#allocation2 + $0x8] sm:$0xff]
    %v23 = vxor.u32 %v21, 2147483648
    %v24 = vxor.u32 %v22, 2147483648
    %v25 = vmul.f32 %v23, 1.442695
    %v26 = vpow.pop %v25
    %v27 = vmul.f32 %v24, 1.442695
    %v28 = vpow.pop %v27
    %v29 = vadd.f32 %v26, 1.0
    %v30 = vadd.f32 %v28, 1.0
    %v31 = vrcp.pop %v29
    %v32 = vmul.f32 1.0, %v31
    %v33 = vrcp.pop %v30
    %v34 = vmul.f32 1.0, %v33
    %35 = vst [vmem:[#allocation5] sm:$0xff] %v32
    %36 = vst [vmem:[#allocation5 + $0x8] sm:$0xff] %v34
    // Predicated region
    $region10: #{tpu_custom_call.1} parent=1 // pred_check
      _
    $region11: #{tpu_custom_call.1} parent=1 // pred_check_branch
      %38 = sbr.rel (0) target = $region13
    $region12: #{tpu_custom_call.1} parent=1 // pred_region
      %s40 = ssub.s32 256, 256
      %41 = vsyncadd [#allocation4], %s40
      %s43 = sshll.u32 [#allocation5], 4
      %s44 = int_to_ptr.vmem [resolvable:$true] %s43
      %46 = dma.vmem_to_hbm [thread:$0]  %s44, 256, %s1, [#allocation4]
    $region13: #{tpu_custom_call.1} parent=1 // pred_fallthru
      _
    // Predicated region
    $region14: #{tpu_custom_call.1} parent=1 // pred_check
      _
    $region15: #{tpu_custom_call.1} parent=1 // pred_check_branch
      %48 = sbr.rel (0) target = $region17
    $region16: #{tpu_custom_call.1} parent=1 // pred_region
      %49 = dma.done [#allocation4], 256
    $region17: #{tpu_custom_call.1} parent=1 // pred_fallthru
      _
    %50 = vsyncpa [#allocation3], 1
    %51 = vsyncpa [#allocation4], 1

</llo_original>
